<compile_context>
chip_gen: v5e
topology: v5e:2x2
jax: 0.10.0
libtpu: 0.0.40
codegen_flags: <defaults>
</compile_context>

<pallas_src>
import functools

import jax
import jax.numpy as jnp
from jax import lax
from jax.experimental import pallas as pl
from jax.experimental.pallas import tpu as pltpu

BN_EPS = 1e-5


def _round_up(a, b):
    return (a + b - 1) // b * b


def _cdiv(a, b):
    return -(-a // b)


def _hw_vmem_bytes():
    """Physical VMEM capacity (bytes); conservative fallback if unqueryable."""
    try:
        info_fn = getattr(pltpu, "get_tpu_info", None)
        if info_fn is not None:
            cap = getattr(info_fn(), "vmem_capacity_bytes", None)
            if cap:
                return int(cap)
    except Exception:
        pass
    return 64 * 1024 * 1024  # v7x-sized fallback: safe on every generation


def _pick_tile(M, in_num, inter, tile_cap=None):
    """Row-tile size from a VMEM byte budget (lane padding included)."""
    vmem_cap = _hw_vmem_bytes()
    row_x_vmem = _round_up(in_num, 128) * 4          # lane-padded f32 x row in VMEM
    per_row = 2 * row_x_vmem + inter * 4 + 64        # x double-buffer + hT temp + slack
    budget = max(vmem_cap // 3, 8 * 1024 * 1024)
    tm_cap = 8192 if vmem_cap <= 64 * 1024 * 1024 else 32768   # v7x vs v5e/v6e
    tm = (budget // per_row) // 128 * 128
    tm = max(128, min(tm, tm_cap, _round_up(M, 128)))
    if tile_cap is not None:
        tm = max(128, min(tm, _round_up(max(tile_cap, 128), 128)))
    nt = _cdiv(M, tm)
    if nt > 1 and nt % 2 == 1:
        nt += 1                                      # even split across 2 TensorCores
        tm = max(128, _round_up(_cdiv(M, nt), 128))
    return tm, nt


# ----------------------------- fused (VMEM-resident) path ---------------------------

def _fused_kernel(m_rows, x_ref, w1_ref, gb_ref, w2_ref, b2_ref, o_ref):
    """x resident in VMEM: exact batch stats + BN + ReLU + inter->1 in one pass."""
    hT = lax.dot_general(
        w1_ref[...], x_ref[...],
        dimension_numbers=(((1,), (1,)), ((), ())),
        preferred_element_type=jnp.float32)                      # (inter, MP)
    gamma = gb_ref[:, 0:1]
    beta = gb_ref[:, 1:2]
    inv_m = 1.0 / m_rows
    mean = jnp.sum(hT, axis=1, keepdims=True) * inv_m            # (inter, 1)
    mp = hT.shape[1]
    valid = lax.broadcasted_iota(jnp.int32, (1, mp), 1) < m_rows
    diff = hT - mean
    dmask = jnp.where(valid, diff, 0.0)                          # exact, padded cols -> 0
    var = jnp.sum(dmask * dmask, axis=1, keepdims=True) * inv_m
    scale = gamma * lax.rsqrt(var + BN_EPS)                      # EUP
    h = jnp.maximum(diff * scale + beta, 0.0)                    # (inter, MP)
    out = lax.dot_general(
        w2_ref[...], h,
        dimension_numbers=(((1,), (0,)), ((), ())),
        preferred_element_type=jnp.float32)                      # (1, MP) on MXU
    o_ref[...] = (out + b2_ref[0]).astype(o_ref.dtype)


# ----------------------------- tiled two-pass path ----------------------------------

def _stats_kernel(x_ref, w1_ref, stats_ref):
    """Per-tile partial per-channel sum / sum-of-squares of h0 = W1 @ x^T."""
    h0 = lax.dot_general(
        w1_ref[...], x_ref[...],
        dimension_numbers=(((1,), (1,)), ((), ())),
        preferred_element_type=jnp.float32)                      # (inter, TM)
    s = jnp.sum(h0, axis=1, keepdims=True)                       # (inter, 1)
    q = jnp.sum(h0 * h0, axis=1, keepdims=True)                  # (inter, 1)
    stats_ref[0] = jnp.concatenate([s, q], axis=1)               # (inter, 2)


def _apply_kernel(x_ref, w1s_ref, shift_ref, w2_ref, b2_ref, o_ref):
    """Recompute scaled h, add folded shift, ReLU, project inter -> 1 on the MXU."""
    hT = lax.dot_general(
        w1s_ref[...], x_ref[...],                                # BN scale pre-folded
        dimension_numbers=(((1,), (1,)), ((), ())),
        preferred_element_type=jnp.float32)                      # (inter, TM)
    hT = jnp.maximum(hT + shift_ref[...], 0.0)
    out = lax.dot_general(
        w2_ref[...], hT,
        dimension_numbers=(((1,), (0,)), ((), ())),
        preferred_element_type=jnp.float32)                      # (1, TM) on MXU
    o_ref[0] = (out + b2_ref[0]).astype(o_ref.dtype)             # lane-dense store


# ----------------------------- wrapper -----------------------------------------------

def outlayer_forward(x, w1, b1, gamma, beta, w2, b2, *,
                     force_two_pass=False, tile_cap=None):
    """
    x:     (B, node_num, in_num) float32
    w1:    (inter, in_num)   b1: (inter,)   [nn.Linear(in_num, inter)]
    gamma: (inter,)          beta: (inter,) [nn.BatchNorm1d(inter)]
    w2:    (1, inter)        b2: (1,)       [nn.Linear(inter, 1)]
    returns (B, node_num, 1) float32

    Note: b1 cancels exactly inside BatchNorm (shift-invariant variance), so it
    never enters the computation.
    """
    B, N, in_num = x.shape
    inter = w1.shape[0]
    M = B * N

    x2d = x.reshape(M, in_num).astype(jnp.float32)
    w1f = w1.astype(jnp.float32)
    w2r = w2.reshape(1, inter).astype(jnp.float32)
    b2r = b2.reshape(1).astype(jnp.float32)
    gammaf = gamma.astype(jnp.float32)
    betaf = beta.astype(jnp.float32)

    vmem_cap = _hw_vmem_bytes()
    vmem_limit = int(min(vmem_cap * 3 // 4, 96 * 1024 * 1024))

    mp_full = _round_up(M, 128)
    # VMEM footprint estimate for the fused path (x lane-padded + hT/h temps).
    fused_bytes = mp_full * (_round_up(in_num, 128) * 4 + 3 * inter * 4 + 64)
    use_fused = (not force_two_pass) and \
        fused_bytes <= min(vmem_cap // 4, 16 * 1024 * 1024)

    if use_fused:
        xpad = jnp.pad(x2d, ((0, mp_full - M), (0, 0))) if mp_full > M else x2d
        gb = jnp.stack([gammaf, betaf], axis=1)                  # (inter, 2)
        out = pl.pallas_call(
            functools.partial(_fused_kernel, M),
            out_shape=jax.ShapeDtypeStruct((1, mp_full), jnp.float32),
            grid_spec=pl.GridSpec(
                grid=(1,),
                in_specs=[
                    pl.BlockSpec((mp_full, in_num), lambda i: (0, 0)),
                    pl.BlockSpec((inter, in_num), lambda i: (0, 0)),
                    pl.BlockSpec((inter, 2), lambda i: (0, 0)),
                    pl.BlockSpec((1, inter), lambda i: (0, 0)),
                    pl.BlockSpec(memory_space=pltpu.MemorySpace.SMEM),
                ],
                out_specs=pl.BlockSpec((1, mp_full), lambda i: (0, 0)),
            ),
            compiler_params=pltpu.CompilerParams(
                dimension_semantics=("arbitrary",),
                vmem_limit_bytes=vmem_limit),
        )(xpad, w1f, gb, w2r, b2r)
        return out.reshape(mp_full)[:M].reshape(B, N, 1)

    # -------- two-pass path: stats over tiles, fold in XLA, apply over tiles --------
    tm, nt = _pick_tile(M, in_num, inter, tile_cap)
    mp = nt * tm
    xpad = jnp.pad(x2d, ((0, mp - M), (0, 0))) if mp > M else x2d

    cparams = pltpu.CompilerParams(
        dimension_semantics=("parallel",),
        vmem_limit_bytes=vmem_limit)

    stats = pl.pallas_call(
        _stats_kernel,
        out_shape=jax.ShapeDtypeStruct((nt, inter, 2), jnp.float32),
        grid_spec=pl.GridSpec(
            grid=(nt,),
            in_specs=[
                pl.BlockSpec((tm, in_num), lambda i: (i, 0)),
                pl.BlockSpec((inter, in_num), lambda i: (0, 0)),
            ],
            out_specs=pl.BlockSpec((1, inter, 2), lambda i: (i, 0, 0)),
        ),
        compiler_params=cparams,
    )(xpad, w1f)

    # Fold BN (batch stats, biased var) into per-channel scale/shift; fold the
    # scale directly into W1 so pass 2 does no per-element scaling.
    tot = jnp.sum(stats, axis=0)                                 # (inter, 2)
    mean0 = tot[:, 0] / M                                        # mean of x @ W1^T
    var = jnp.maximum(tot[:, 1] / M - mean0 * mean0, 0.0)        # shift-invariant
    scale = gammaf * lax.rsqrt(var + BN_EPS)
    shift = (betaf - mean0 * scale).reshape(inter, 1)            # b1 cancels exactly
    w1s = w1f * scale[:, None]

    out = pl.pallas_call(
        _apply_kernel,
        out_shape=jax.ShapeDtypeStruct((nt, 1, tm), jnp.float32),
        grid_spec=pl.GridSpec(
            grid=(nt,),
            in_specs=[
                pl.BlockSpec((tm, in_num), lambda i: (i, 0)),
                pl.BlockSpec((inter, in_num), lambda i: (0, 0)),
                pl.BlockSpec((inter, 1), lambda i: (0, 0)),
                pl.BlockSpec((1, inter), lambda i: (0, 0)),
                pl.BlockSpec(memory_space=pltpu.MemorySpace.SMEM),
            ],
            out_specs=pl.BlockSpec((1, 1, tm), lambda i: (i, 0, 0)),
        ),
        compiler_params=cparams,
    )(xpad, w1s, shift, w2r, b2r)

    # (nt, 1, tm) -> flat rows -> drop padding -> (B, N, 1)
    return out.reshape(mp)[:M].reshape(B, N, 1)


def _ref_forward(x, w1, b1, gamma, beta, w2, b2):
    """Pure-JAX reference matching the PyTorch training-mode forward."""
    hp = lax.Precision.HIGHEST
    h = jnp.einsum("bni,oi->bno", x, w1, precision=hp) + b1
    mean = jnp.mean(h, axis=(0, 1), keepdims=True)
    var = jnp.mean((h - mean) ** 2, axis=(0, 1), keepdims=True)  # biased
    h = (h - mean) / jnp.sqrt(var + BN_EPS)
    h = h * gamma + beta
    h = jnp.maximum(h, 0.0)
    return jnp.einsum("bnc,oc->bno", h, w2, precision=hp) + b2


if __name__ == "__main__":
    # Small shapes consistent with OutLayer(in_num, node_num, layer_num=2, inter_num)
    B, node_num, in_num, inter_num = 2, 8, 32, 64

    key = jax.random.PRNGKey(0)
    kx, kw1, kb1, kw2, kb2, kx2 = jax.random.split(key, 6)

    x = jax.random.normal(kx, (B, node_num, in_num), jnp.float32)

    # PyTorch-style parameter layouts and init.
    bound1 = 1.0 / (in_num ** 0.5)
    w1 = jax.random.uniform(kw1, (inter_num, in_num), jnp.float32, -bound1, bound1)
    b1 = jax.random.uniform(kb1, (inter_num,), jnp.float32, -bound1, bound1)
    gamma = jnp.ones((inter_num,), jnp.float32)
    beta = jnp.zeros((inter_num,), jnp.float32)
    bound2 = 1.0 / (inter_num ** 0.5)
    w2 = jax.random.uniform(kw2, (1, inter_num), jnp.float32, -bound2, bound2)
    b2 = jax.random.uniform(kb2, (1,), jnp.float32, -bound2, bound2)

    # Primary (small) check -> fused VMEM-resident path.
    out = jax.block_until_ready(outlayer_forward(x, w1, b1, gamma, beta, w2, b2))
    ref = _ref_forward(x, w1, b1, gamma, beta, w2, b2)
    assert out.shape == (B, node_num, 1)
    assert jnp.allclose(out, ref, atol=1e-3, rtol=1e-3), "mismatch vs reference (fused)"

    # Secondary check: medium size, still fused, with row padding (M=4500).
    B2, N2 = 3, 1500
    x_big = jax.random.normal(kx2, (B2, N2, in_num), jnp.float32)
    out_big = jax.block_until_ready(
        outlayer_forward(x_big, w1, b1, gamma, beta, w2, b2))
    ref_big = _ref_forward(x_big, w1, b1, gamma, beta, w2, b2)
    assert out_big.shape == (B2, N2, 1)
    assert jnp.allclose(out_big, ref_big, atol=1e-3, rtol=1e-3), \
        "mismatch vs reference (fused, padded)"

    # Tertiary check: force the tiled two-pass path with multiple tiles + padding.
    out_tiled = jax.block_until_ready(
        outlayer_forward(x_big, w1, b1, gamma, beta, w2, b2,
                         force_two_pass=True, tile_cap=2048))
    assert out_tiled.shape == (B2, N2, 1)
    assert jnp.allclose(out_tiled, ref_big, atol=1e-3, rtol=1e-3), \
        "mismatch vs reference (two-pass tiled)"

    print("KERNEL_OK")
</pallas_src>

<mosaic_0001>
module attributes {stable_mosaic.version = 11 : i64} {
  func.func @_fused_kernel(%arg0: i32, %arg1: memref<128x32xf32, #tpu.memory_space<vmem>>, %arg2: memref<64x32xf32, #tpu.memory_space<vmem>>, %arg3: memref<64x2xf32, #tpu.memory_space<vmem>>, %arg4: memref<1x64xf32, #tpu.memory_space<vmem>>, %arg5: memref<1xf32, #tpu.memory_space<smem>>, %arg6: memref<1x128xf32, #tpu.memory_space<vmem>>) attributes {dimension_semantics = [#tpu.dimension_semantics<arbitrary>], iteration_bounds = array<i64: 1>, scalar_prefetch = 0 : i64, scratch_operands = 0 : i64, tpu.core_type = #tpu.core_type<tc>, window_params = [{pipeline_mode = #tpu.pipeline_mode<synchronous>, transform_indices = @transform_0, window_bounds = array<i64: 128, 32>}, {pipeline_mode = #tpu.pipeline_mode<synchronous>, transform_indices = @transform_1, window_bounds = array<i64: 64, 32>}, {pipeline_mode = #tpu.pipeline_mode<synchronous>, transform_indices = @transform_2, window_bounds = array<i64: 64, 2>}, {pipeline_mode = #tpu.pipeline_mode<synchronous>, transform_indices = @transform_3, window_bounds = array<i64: 1, 64>}, {transform_indices = @transform_4, window_bounds = array<i64: 1>}, {pipeline_mode = #tpu.pipeline_mode<synchronous>, transform_indices = @transform_5, window_bounds = array<i64: 1, 128>}]} {
    %c0 = arith.constant 0 : index
    %c0_0 = arith.constant 0 : index
    %0 = vector.load %arg2[%c0, %c0_0] : memref<64x32xf32, #tpu.memory_space<vmem>>, vector<64x32xf32>
    %c0_1 = arith.constant 0 : index
    %c0_2 = arith.constant 0 : index
    %1 = vector.load %arg1[%c0_1, %c0_2] : memref<128x32xf32, #tpu.memory_space<vmem>>, vector<128x32xf32>
    %cst = arith.constant dense<0.000000e+00> : vector<64x128xf32>
    %2 = tpu.matmul %0, %1, %cst {dimension_numbers = #tpu.dot_dimension_numbers<[1], [1], [0], [0], [0, 0, 1, 0], [], []>} : vector<64x32xf32>, vector<128x32xf32>, vector<64x128xf32> -> vector<64x128xf32>
    %c0_3 = arith.constant 0 : index
    %c0_4 = arith.constant 0 : index
    %3 = vector.load %arg3[%c0_3, %c0_4] : memref<64x2xf32, #tpu.memory_space<vmem>>, vector<64x1xf32>
    %c0_5 = arith.constant 0 : index
    %c1 = arith.constant 1 : index
    %4 = vector.load %arg3[%c0_5, %c1] : memref<64x2xf32, #tpu.memory_space<vmem>>, vector<64x1xf32>
    %cst_6 = arith.constant dense<0.000000e+00> : vector<64xf32>
    %5 = vector.multi_reduction <add>, %2, %cst_6 [1] : vector<64x128xf32> to vector<64xf32>
    %6 = vector.shape_cast %5 : vector<64xf32> to vector<64x1xf32>
    %cst_7 = arith.constant 6.250000e-02 : f32
    %7 = vector.broadcast %cst_7 : f32 to vector<64x1xf32>
    %8 = arith.mulf %6, %7 : vector<64x1xf32>
    %9 = tpu.iota {dimensions = array<i32: 1>} : vector<1x128xi32>
    %c16_i32 = arith.constant 16 : i32
    %10 = vector.broadcast %c16_i32 : i32 to vector<1x128xi32>
    %11 = arith.cmpi slt, %9, %10 : vector<1x128xi32>
    %12 = vector.broadcast %8 : vector<64x1xf32> to vector<64x128xf32>
    %13 = arith.subf %2, %12 : vector<64x128xf32>
    %cst_8 = arith.constant 0.000000e+00 : f32
    %14 = vector.shape_cast %11 : vector<1x128xi1> to vector<1x128xi1>
    %15 = vector.broadcast %14 : vector<1x128xi1> to vector<64x128xi1>
    %16 = vector.broadcast %cst_8 : f32 to vector<64x128xf32>
    %17 = arith.select %15, %13, %16 : vector<64x128xi1>, vector<64x128xf32>
    %18 = arith.mulf %17, %17 : vector<64x128xf32>
    %cst_9 = arith.constant dense<0.000000e+00> : vector<64xf32>
    %19 = vector.multi_reduction <add>, %18, %cst_9 [1] : vector<64x128xf32> to vector<64xf32>
    %20 = vector.shape_cast %19 : vector<64xf32> to vector<64x1xf32>
    %cst_10 = arith.constant 6.250000e-02 : f32
    %21 = vector.broadcast %cst_10 : f32 to vector<64x1xf32>
    %22 = arith.mulf %20, %21 : vector<64x1xf32>
    %cst_11 = arith.constant 9.99999974E-6 : f32
    %23 = vector.broadcast %cst_11 : f32 to vector<64x1xf32>
    %24 = arith.addf %22, %23 : vector<64x1xf32>
    %25 = math.rsqrt %24 : vector<64x1xf32>
    %26 = arith.mulf %3, %25 : vector<64x1xf32>
    %27 = vector.broadcast %26 : vector<64x1xf32> to vector<64x128xf32>
    %28 = arith.mulf %13, %27 : vector<64x128xf32>
    %29 = vector.broadcast %4 : vector<64x1xf32> to vector<64x128xf32>
    %30 = arith.addf %28, %29 : vector<64x128xf32>
    %cst_12 = arith.constant 0.000000e+00 : f32
    %31 = vector.broadcast %cst_12 : f32 to vector<64x128xf32>
    %32 = arith.maximumf %30, %31 : vector<64x128xf32>
    %c0_13 = arith.constant 0 : index
    %c0_14 = arith.constant 0 : index
    %33 = vector.load %arg4[%c0_13, %c0_14] : memref<1x64xf32, #tpu.memory_space<vmem>>, vector<1x64xf32>
    %cst_15 = arith.constant dense<0.000000e+00> : vector<1x128xf32>
    %34 = tpu.matmul %33, %32, %cst_15 {dimension_numbers = #tpu.dot_dimension_numbers<[1], [0], [0], [1], [0, 0, 1, 1], [], []>} : vector<1x64xf32>, vector<64x128xf32>, vector<1x128xf32> -> vector<1x128xf32>
    %c0_16 = arith.constant 0 : index
    %35 = memref.load %arg5[%c0_16] : memref<1xf32, #tpu.memory_space<smem>>
    %36 = vector.broadcast %35 : f32 to vector<1x128xf32>
    %37 = arith.addf %34, %36 : vector<1x128xf32>
    %c0_17 = arith.constant 0 : index
    %c0_18 = arith.constant 0 : index
    %38 = vector.load %arg6[%c0_17, %c0_18] : memref<1x128xf32, #tpu.memory_space<vmem>>, vector<1x128xf32>
    tpu.vector_store %arg6[%c0_17, %c0_18], %37 {strides = array<i32>} : memref<1x128xf32, #tpu.memory_space<vmem>>, vector<1x128xf32>,
    return
  }
  func.func @transform_0(%arg0: i32) -> (i32, i32) {
    %c0_i32 = arith.constant 0 : i32
    %c0_i32_0 = arith.constant 0 : i32
    %c0_i32_1 = arith.constant 0 : i32
    return %c0_i32, %c0_i32_0 : i32, i32
  }
  func.func @transform_1(%arg0: i32) -> (i32, i32) {
    %c0_i32 = arith.constant 0 : i32
    %c0_i32_0 = arith.constant 0 : i32
    %c0_i32_1 = arith.constant 0 : i32
    return %c0_i32, %c0_i32_0 : i32, i32
  }
  func.func @transform_2(%arg0: i32) -> (i32, i32) {
    %c0_i32 = arith.constant 0 : i32
    %c0_i32_0 = arith.constant 0 : i32
    %c0_i32_1 = arith.constant 0 : i32
    return %c0_i32, %c0_i32_0 : i32, i32
  }
  func.func @transform_3(%arg0: i32) -> (i32, i32) {
    %c0_i32 = arith.constant 0 : i32
    %c0_i32_0 = arith.constant 0 : i32
    %c0_i32_1 = arith.constant 0 : i32
    return %c0_i32, %c0_i32_0 : i32, i32
  }
  func.func @transform_4(%arg0: i32) -> i32 {
    %c0_i32 = arith.constant 0 : i32
    %c0_i32_0 = arith.constant 0 : i32
    return %c0_i32 : i32
  }
  func.func @transform_5(%arg0: i32) -> (i32, i32) {
    %c0_i32 = arith.constant 0 : i32
    %c0_i32_0 = arith.constant 0 : i32
    %c0_i32_1 = arith.constant 0 : i32
    return %c0_i32, %c0_i32_0 : i32, i32
  }
}

</mosaic_0001>

<llo_original>
// kernel: tpu_custom_call.1
$region0: #{tpu_custom_call.1}
  #allocation0 [shape = 'u32[]', space=smem, size = 0x4, offset = 0x4, fixed_abs, tag = 'smem constant byte address 0x4 - core index']
  #allocation1 [shape = 'u32[72,128]{1,0:T(1,128)}', space=vmem, size = 0x9000, scoped, tag = 'internal scratch']
  #allocation2 [shape = 'f32[1]{0:T(128)S(6)}', space=smem, size = 0x200, scoped, tag = 'scoped memory for tpu_custom_call.1']
  %s0 = inlined_call_operand.vmem [shape: f32[128,32], index: 0, kind: input, shape index: {}]
  %s1 = inlined_call_operand.vmem [shape: f32[64,32], index: 1, kind: input, shape index: {}]
  %s2 = inlined_call_operand.vmem [shape: f32[64,2], index: 2, kind: input, shape index: {}]
  %s3 = inlined_call_operand.vmem [shape: f32[1,64], index: 3, kind: input, shape index: {}]
  %s4 = inlined_call_operand.<no memory space> [shape: f32[1], index: 4, kind: input, shape index: {}]
  %s5 = inlined_call_operand.hbm [shape: f32[1,128], index: 5, kind: output, shape index: {}]
  %s6 = sld [smem:[#allocation0]]
  $region30: #{tpu_custom_call.1} parent=0
    _
  %s8 = ssub.s32 1, %s6
  %s9 = scalar_select 0, %s8, %s6
  %10 = sst [smem:[#allocation2]] %s4
  $region1: #{tpu_custom_call.1} parent=0
    #allocation3 [shape = 'u8[512]{0}', space=vmem, size = 0x400, scoped, tag = 'output window, operand 0, single buffered']
    #allocation4 [shape = 's32[1]{0}', space=sflag, size = 0x4, scoped, tag = 'scoped memory for tpu_custom_call.1']
    %11 = vsyncpa [#allocation4], 0
    // Predicated region
    $region2: #{tpu_custom_call.1} parent=1 // pred_check
      _
    $region3: #{tpu_custom_call.1} parent=1 // pred_check_branch
      %13 = sbr.rel (0) target = $region5
    $region4: #{tpu_custom_call.1} parent=1 // pred_region
      _
    $region5: #{tpu_custom_call.1} parent=1 // pred_fallthru
      _
    // Predicated region
    $region6: #{tpu_custom_call.1} parent=1 // pred_check
      _
    $region7: #{tpu_custom_call.1} parent=1 // pred_check_branch
      %15 = sbr.rel (0) target = $region9
    $region8: #{tpu_custom_call.1} parent=1 // pred_region
      _
    $region9: #{tpu_custom_call.1} parent=1 // pred_fallthru
      _
    // Predicated region
    $region10: #{tpu_custom_call.1} parent=1 // pred_check
      _
    $region11: #{tpu_custom_call.1} parent=1 // pred_check_branch
      %17 = sbr.rel (0) target = $region13
    $region12: #{tpu_custom_call.1} parent=1 // pred_region
      _
    $region13: #{tpu_custom_call.1} parent=1 // pred_fallthru
      _
    // Predicated region
    $region14: #{tpu_custom_call.1} parent=1 // pred_check
      _
    $region15: #{tpu_custom_call.1} parent=1 // pred_check_branch
      %19 = sbr.rel (0) target = $region17
    $region16: #{tpu_custom_call.1} parent=1 // pred_region
      _
    $region17: #{tpu_custom_call.1} parent=1 // pred_fallthru
      _
    // Predicated region
    $region18: #{tpu_custom_call.1} parent=1 // pred_check
      _
    $region19: #{tpu_custom_call.1} parent=1 // pred_check_branch
      %21 = sbr.rel (0) target = $region21
    $region20: #{tpu_custom_call.1} parent=1 // pred_region
      _
    $region21: #{tpu_custom_call.1} parent=1 // pred_fallthru
      _
    %v22 = vld [vmem:[%s1] sm:$0xff]
    %v23 = vld [vmem:[%s1 + $0x8] sm:$0xff]
    %v24 = vld [vmem:[%s1 + $0x10] sm:$0xff]
    %v25 = vld [vmem:[%s1 + $0x18] sm:$0xff]
    %v26 = vld [vmem:[%s1 + $0x20] sm:$0xff]
    %v27 = vld [vmem:[%s1 + $0x28] sm:$0xff]
    %v28 = vld [vmem:[%s1 + $0x30] sm:$0xff]
    %v29 = vld [vmem:[%s1 + $0x38] sm:$0xff]
    %v30 = vld [vmem:[%s0] sm:$0xff]
    %v31 = vld [vmem:[%s0 + $0x8] sm:$0xff]
    %v32 = vld [vmem:[%s0 + $0x10] sm:$0xff]
    %v33 = vld [vmem:[%s0 + $0x18] sm:$0xff]
    %v34 = vld [vmem:[%s0 + $0x20] sm:$0xff]
    %v35 = vld [vmem:[%s0 + $0x28] sm:$0xff]
    %v36 = vld [vmem:[%s0 + $0x30] sm:$0xff]
    %v37 = vld [vmem:[%s0 + $0x38] sm:$0xff]
    %v38 = vld [vmem:[%s0 + $0x40] sm:$0xff]
    %v39 = vld [vmem:[%s0 + $0x48] sm:$0xff]
    %v40 = vld [vmem:[%s0 + $0x50] sm:$0xff]
    %v41 = vld [vmem:[%s0 + $0x58] sm:$0xff]
    %v42 = vld [vmem:[%s0 + $0x60] sm:$0xff]
    %v43 = vld [vmem:[%s0 + $0x68] sm:$0xff]
    %v44 = vld [vmem:[%s0 + $0x70] sm:$0xff]
    %v45 = vld [vmem:[%s0 + $0x78] sm:$0xff]
    %vm46 = vcmask 261120
    %v48 = vsel %vm46, %v22, 0
    %v51 = vsel %vm46, %v23, 0
    %v54 = vsel %vm46, %v24, 0
    %v57 = vsel %vm46, %v25, 0
    %v60 = vsel %vm46, %v26, 0
    %v63 = vsel %vm46, %v27, 0
    %v66 = vsel %vm46, %v28, 0
    %v69 = vsel %vm46, %v29, 0
    %v72 = vsel %vm46, %v30, 0
    %v75 = vsel %vm46, %v31, 0
    %v78 = vsel %vm46, %v32, 0
    %v81 = vsel %vm46, %v33, 0
    %v84 = vsel %vm46, %v34, 0
    %v87 = vsel %vm46, %v35, 0
    %v90 = vsel %vm46, %v36, 0
    %v93 = vsel %vm46, %v37, 0
    %v96 = vsel %vm46, %v38, 0
    %v99 = vsel %vm46, %v39, 0
    %v102 = vsel %vm46, %v40, 0
    %v105 = vsel %vm46, %v41, 0
    %v108 = vsel %vm46, %v42, 0
    %v111 = vsel %vm46, %v43, 0
    %v114 = vsel %vm46, %v44, 0
    %v117 = vsel %vm46, %v45, 0
    %119 = vmatpush.xpose.msra.mxu0 %v117
    %120 = vmatpush.xpose.msra.mxu0 %v114
    %121 = vmatpush.xpose.msra.mxu0 %v111
    %122 = vmatpush.xpose.msra.mxu0 %v108
    %123 = vmatpush.xpose.msra.mxu0 %v105
    %124 = vmatpush.xpose.msra.mxu0 %v102
    %125 = vmatpush.xpose.msra.mxu0 %v99
    %126 = vmatpush.xpose.msra.mxu0 %v96
    %127 = vmatpush.xpose.msra.mxu0 %v93
    %128 = vmatpush.xpose.msra.mxu0 %v90
    %129 = vmatpush.xpose.msra.mxu0 %v87
    %130 = vmatpush.xpose.msra.mxu0 %v84
    %131 = vmatpush.xpose.msra.mxu0 %v81
    %132 = vmatpush.xpose.msra.mxu0 %v78
    %133 = vmatpush.xpose.msra.mxu0 %v75
    %134 = vmatpush.xpose.msra.mxu0 %v72
    %135 = vmatmul.f32.gmra.mxu0 %v48
    %v136 = vpop.f32.mrf.mxu0
    %v137 = vadd.f32 0.0, %v136
    %138 = vmatmul.f32.gmra.mxu0 %v51
    %v139 = vpop.f32.mrf.mxu0
    %v140 = vadd.f32 0.0, %v139
    %141 = vmatmul.f32.gmra.mxu0 %v54
    %v142 = vpop.f32.mrf.mxu0
    %v143 = vadd.f32 0.0, %v142
    %144 = vmatmul.f32.gmra.mxu0 %v57
    %v145 = vpop.f32.mrf.mxu0
    %v146 = vadd.f32 0.0, %v145
    %147 = vmatmul.f32.gmra.mxu0 %v60
    %v148 = vpop.f32.mrf.mxu0
    %v149 = vadd.f32 0.0, %v148
    %150 = vmatmul.f32.gmra.mxu0 %v63
    %v151 = vpop.f32.mrf.mxu0
    %v152 = vadd.f32 0.0, %v151
    %153 = vmatmul.f32.gmra.mxu0 %v66
    %v154 = vpop.f32.mrf.mxu0
    %v155 = vadd.f32 0.0, %v154
    %156 = vmatmul.f32.gmra.mxu0 %v69
    %v157 = vpop.f32.mrf.mxu0
    %v158 = vadd.f32 0.0, %v157
    %159 = vdwg.mxu0
    %v160 = vld [vmem:[%s2] sm:$0xff]
    %v161 = vld [vmem:[%s2 + $0x8] sm:$0xff]
    %v162 = vld [vmem:[%s2 + $0x10] sm:$0xff]
    %v163 = vld [vmem:[%s2 + $0x18] sm:$0xff]
    %v164 = vld [vmem:[%s2 + $0x20] sm:$0xff]
    %v165 = vld [vmem:[%s2 + $0x28] sm:$0xff]
    %v166 = vld [vmem:[%s2 + $0x30] sm:$0xff]
    %v167 = vld [vmem:[%s2 + $0x38] sm:$0xff]
    %168 = vadd.xlane.f32.xlu0 %v137
    %v169 = vpop.xlane.xlu0 %168
    %170 = vadd.xlane.f32.xlu0 %v140
    %v171 = vpop.xlane.xlu0 %170
    %172 = vadd.xlane.f32.xlu0 %v143
    %v173 = vpop.xlane.xlu0 %172
    %174 = vadd.xlane.f32.xlu0 %v146
    %v175 = vpop.xlane.xlu0 %174
    %176 = vadd.xlane.f32.xlu0 %v149
    %v177 = vpop.xlane.xlu0 %176
    %178 = vadd.xlane.f32.xlu0 %v152
    %v179 = vpop.xlane.xlu0 %178
    %180 = vadd.xlane.f32.xlu0 %v155
    %v181 = vpop.xlane.xlu0 %180
    %182 = vadd.xlane.f32.xlu0 %v158
    %v183 = vpop.xlane.xlu0 %182
    %v184 = vmul.f32 %v169, 0.0625
    %v185 = vmul.f32 %v171, 0.0625
    %v186 = vmul.f32 %v173, 0.0625
    %v187 = vmul.f32 %v175, 0.0625
    %v188 = vmul.f32 %v177, 0.0625
    %v189 = vmul.f32 %v179, 0.0625
    %v190 = vmul.f32 %v181, 0.0625
    %v191 = vmul.f32 %v183, 0.0625
    %v192 = vlaneseq
    %v193 = vand.u32 %v192, 127
    %vm194 = vcmp.lt.s32.totalorder %v193, 16
    %v195 = vsub.f32 %v137, %v184
    %v196 = vsub.f32 %v140, %v185
    %v197 = vsub.f32 %v143, %v186
    %v198 = vsub.f32 %v146, %v187
    %v199 = vsub.f32 %v149, %v188
    %v200 = vsub.f32 %v152, %v189
    %v201 = vsub.f32 %v155, %v190
    %v202 = vsub.f32 %v158, %v191
    %v203 = vsel %vm194, 1, 0
    %vm204 = vcmp.eq.s32.totalorder %v203, 1
    %v205 = vsel %vm204, %v195, 0.0
    %v206 = vsel %vm204, %v196, 0.0
    %v207 = vsel %vm204, %v197, 0.0
    %v208 = vsel %vm204, %v198, 0.0
    %v209 = vsel %vm204, %v199, 0.0
    %v210 = vsel %vm204, %v200, 0.0
    %v211 = vsel %vm204, %v201, 0.0
    %v212 = vsel %vm204, %v202, 0.0
    %v213 = vmul.f32 %v205, %v205
    %v214 = vmul.f32 %v206, %v206
    %v215 = vmul.f32 %v207, %v207
    %v216 = vmul.f32 %v208, %v208
    %v217 = vmul.f32 %v209, %v209
    %v218 = vmul.f32 %v210, %v210
    %v219 = vmul.f32 %v211, %v211
    %v220 = vmul.f32 %v212, %v212
    %221 = vadd.xlane.f32.xlu0 %v213
    %v222 = vpop.xlane.xlu0 %221
    %223 = vadd.xlane.f32.xlu0 %v214
    %v224 = vpop.xlane.xlu0 %223
    %225 = vadd.xlane.f32.xlu0 %v215
    %v226 = vpop.xlane.xlu0 %225
    %227 = vadd.xlane.f32.xlu0 %v216
    %v228 = vpop.xlane.xlu0 %227
    %229 = vadd.xlane.f32.xlu0 %v217
    %v230 = vpop.xlane.xlu0 %229
    %231 = vadd.xlane.f32.xlu0 %v218
    %v232 = vpop.xlane.xlu0 %231
    %233 = vadd.xlane.f32.xlu0 %v219
    %v234 = vpop.xlane.xlu0 %233
    %235 = vadd.xlane.f32.xlu0 %v220
    %v236 = vpop.xlane.xlu0 %235
    %v237 = vmul.f32 %v222, 0.0625
    %v238 = vmul.f32 %v224, 0.0625
    %v239 = vmul.f32 %v226, 0.0625
    %v240 = vmul.f32 %v228, 0.0625
    %v241 = vmul.f32 %v230, 0.0625
    %v242 = vmul.f32 %v232, 0.0625
    %v243 = vmul.f32 %v234, 0.0625
    %v244 = vmul.f32 %v236, 0.0625
    %v245 = vadd.f32 %v237, 1e-05
    %v246 = vadd.f32 %v238, 1e-05
    %v247 = vadd.f32 %v239, 1e-05
    %v248 = vadd.f32 %v240, 1e-05
    %v249 = vadd.f32 %v241, 1e-05
    %v250 = vadd.f32 %v242, 1e-05
    %v251 = vadd.f32 %v243, 1e-05
    %v252 = vadd.f32 %v244, 1e-05
    %v253 = vrsqrt.pop %v245
    %v254 = vmul.f32 %v253, %v245
    %v255 = vmul.f32 %v254, %v253
    %v256 = vmul.f32 0.5, %v255
    %v257 = vsub.f32 1.5, %v256
    %v258 = vmul.f32 %v253, %v257
    %vm259 = vweird.f32 %v245
    %vm260 = vweird.f32 %v253
    %vm261 = vmor %vm259, %vm260
    %v262 = vsel %vm261, %v253, %v258
    %v263 = vrsqrt.pop %v246
    %v264 = vmul.f32 %v263, %v246
    %v265 = vmul.f32 %v264, %v263
    %v266 = vmul.f32 0.5, %v265
    %v267 = vsub.f32 1.5, %v266
    %v268 = vmul.f32 %v263, %v267
    %vm269 = vweird.f32 %v246
    %vm270 = vweird.f32 %v263
    %vm271 = vmor %vm269, %vm270
    %v272 = vsel %vm271, %v263, %v268
    %v273 = vrsqrt.pop %v247
    %v274 = vmul.f32 %v273, %v247
    %v275 = vmul.f32 %v274, %v273
    %v276 = vmul.f32 0.5, %v275
    %v277 = vsub.f32 1.5, %v276
    %v278 = vmul.f32 %v273, %v277
    %vm279 = vweird.f32 %v247
    %vm280 = vweird.f32 %v273
    %vm281 = vmor %vm279, %vm280
    %v282 = vsel %vm281, %v273, %v278
    %v283 = vrsqrt.pop %v248
    %v284 = vmul.f32 %v283, %v248
    %v285 = vmul.f32 %v284, %v283
    %v286 = vmul.f32 0.5, %v285
    %v287 = vsub.f32 1.5, %v286
    %v288 = vmul.f32 %v283, %v287
    %vm289 = vweird.f32 %v248
    %vm290 = vweird.f32 %v283
    %vm291 = vmor %vm289, %vm290
    %v292 = vsel %vm291, %v283, %v288
    %v293 = vrsqrt.pop %v249
    %v294 = vmul.f32 %v293, %v249
    %v295 = vmul.f32 %v294, %v293
    %v296 = vmul.f32 0.5, %v295
    %v297 = vsub.f32 1.5, %v296
    %v298 = vmul.f32 %v293, %v297
    %vm299 = vweird.f32 %v249
    %vm300 = vweird.f32 %v293
    %vm301 = vmor %vm299, %vm300
    %v302 = vsel %vm301, %v293, %v298
    %v303 = vrsqrt.pop %v250
    %v304 = vmul.f32 %v303, %v250
    %v305 = vmul.f32 %v304, %v303
    %v306 = vmul.f32 0.5, %v305
    %v307 = vsub.f32 1.5, %v306
    %v308 = vmul.f32 %v303, %v307
    %vm309 = vweird.f32 %v250
    %vm310 = vweird.f32 %v303
    %vm311 = vmor %vm309, %vm310
    %v312 = vsel %vm311, %v303, %v308
    %v313 = vrsqrt.pop %v251
    %v314 = vmul.f32 %v313, %v251
    %v315 = vmul.f32 %v314, %v313
    %v316 = vmul.f32 0.5, %v315
    %v317 = vsub.f32 1.5, %v316
    %v318 = vmul.f32 %v313, %v317
    %vm319 = vweird.f32 %v251
    %vm320 = vweird.f32 %v313
    %vm321 = vmor %vm319, %vm320
    %v322 = vsel %vm321, %v313, %v318
    %v323 = vrsqrt.pop %v252
    %v324 = vmul.f32 %v323, %v252
    %v325 = vmul.f32 %v324, %v323
    %v326 = vmul.f32 0.5, %v325
    %v327 = vsub.f32 1.5, %v326
    %v328 = vmul.f32 %v323, %v327
    %vm329 = vweird.f32 %v252
    %vm330 = vweird.f32 %v323
    %vm331 = vmor %vm329, %vm330
    %v332 = vsel %vm331, %v323, %v328
    %v333 = vmul.f32 %v160, %v262
    %v334 = vmul.f32 %v161, %v272
    %v335 = vmul.f32 %v162, %v282
    %v336 = vmul.f32 %v163, %v292
    %v337 = vmul.f32 %v164, %v302
    %v338 = vmul.f32 %v165, %v312
    %v339 = vmul.f32 %v166, %v322
    %v340 = vmul.f32 %v167, %v332
    %342 = vset.pattern.permute.xlu0 0
    %343 = vperm.xlu0 %342, %v333
    %v344 = vpop.permute.xlu0 %343
    %347 = vset.pattern.permute.xlu0 0
    %348 = vperm.xlu0 %347, %v334
    %v349 = vpop.permute.xlu0 %348
    %352 = vset.pattern.permute.xlu0 0
    %353 = vperm.xlu0 %352, %v335
    %v354 = vpop.permute.xlu0 %353
    %357 = vset.pattern.permute.xlu0 0
    %358 = vperm.xlu0 %357, %v336
    %v359 = vpop.permute.xlu0 %358
    %362 = vset.pattern.permute.xlu0 0
    %363 = vperm.xlu0 %362, %v337
    %v364 = vpop.permute.xlu0 %363
    %367 = vset.pattern.permute.xlu0 0
    %368 = vperm.xlu0 %367, %v338
    %v369 = vpop.permute.xlu0 %368
    %372 = vset.pattern.permute.xlu0 0
    %373 = vperm.xlu0 %372, %v339
    %v374 = vpop.permute.xlu0 %373
    %377 = vset.pattern.permute.xlu0 0
    %378 = vperm.xlu0 %377, %v340
    %v379 = vpop.permute.xlu0 %378
    %v381 = vmul.f32 %v195, %v344
    %v382 = vmul.f32 %v196, %v349
    %v383 = vmul.f32 %v197, %v354
    %v384 = vmul.f32 %v198, %v359
    %v385 = vmul.f32 %v199, %v364
    %v386 = vmul.f32 %v200, %v369
    %v387 = vmul.f32 %v201, %v374
    %v388 = vmul.f32 %v202, %v379
    %390 = vset.pattern.permute.xlu0 1
    %391 = vperm.xlu0 %390, %v160
    %v392 = vpop.permute.xlu0 %391
    %395 = vset.pattern.permute.xlu0 1
    %396 = vperm.xlu0 %395, %v161
    %v397 = vpop.permute.xlu0 %396
    %400 = vset.pattern.permute.xlu0 1
    %401 = vperm.xlu0 %400, %v162
    %v402 = vpop.permute.xlu0 %401
    %405 = vset.pattern.permute.xlu0 1
    %406 = vperm.xlu0 %405, %v163
    %v407 = vpop.permute.xlu0 %406
    %410 = vset.pattern.permute.xlu0 1
    %411 = vperm.xlu0 %410, %v164
    %v412 = vpop.permute.xlu0 %411
    %415 = vset.pattern.permute.xlu0 1
    %416 = vperm.xlu0 %415, %v165
    %v417 = vpop.permute.xlu0 %416
    %420 = vset.pattern.permute.xlu0 1
    %421 = vperm.xlu0 %420, %v166
    %v422 = vpop.permute.xlu0 %421
    %425 = vset.pattern.permute.xlu0 1
    %426 = vperm.xlu0 %425, %v167
    %v427 = vpop.permute.xlu0 %426
    %v429 = vadd.f32 %v381, %v392
    %v430 = vadd.f32 %v382, %v397
    %v431 = vadd.f32 %v383, %v402
    %v432 = vadd.f32 %v384, %v407
    %v433 = vadd.f32 %v385, %v412
    %v434 = vadd.f32 %v386, %v417
    %v435 = vadd.f32 %v387, %v422
    %v436 = vadd.f32 %v388, %v427
    %v437 = vmax.f32 %v429, 0.0
    %v438 = vmax.f32 %v430, 0.0
    %v439 = vmax.f32 %v431, 0.0
    %v440 = vmax.f32 %v432, 0.0
    %v441 = vmax.f32 %v433, 0.0
    %v442 = vmax.f32 %v434, 0.0
    %v443 = vmax.f32 %v435, 0.0
    %v444 = vmax.f32 %v436, 0.0
    %v445 = vld [vmem:[%s3] sm:$0x1]
    %s446 = sld [smem:[#allocation2]]
    %v447 = vstv %s446
    %vm448 = vcmask 523264
    %v450 = vsel %vm448, %v445, 0
    %452 = vmatpush.msra.mxu0 0.0
    %453 = vmatpush.msra.mxu0 0.0
    %454 = vmatpush.msra.mxu0 0.0
    %455 = vmatpush.msra.mxu0 0.0
    %456 = vmatpush.msra.mxu0 0.0
    %457 = vmatpush.msra.mxu0 0.0
    %458 = vmatpush.msra.mxu0 0.0
    %459 = vmatpush.msra.mxu0 0.0
    %460 = vmatpush.msra.mxu0 %v444
    %461 = vmatpush.msra.mxu0 %v443
    %462 = vmatpush.msra.mxu0 %v442
    %463 = vmatpush.msra.mxu0 %v441
    %464 = vmatpush.msra.mxu0 %v440
    %465 = vmatpush.msra.mxu0 %v439
    %466 = vmatpush.msra.mxu0 %v438
    %467 = vmatpush.msra.mxu0 %v437
    %468 = vmatmul.f32.gmra.mxu0 %v450
    %v469 = vpop.f32.mrf.mxu0
    %v470 = vadd.f32 %v447, %v469
    %471 = vdwg.mxu0
    %472 = vst [vmem:[#allocation3] sm:$0x1] %v470
    // Predicated region
    $region22: #{tpu_custom_call.1} parent=1 // pred_check
      _
    $region23: #{tpu_custom_call.1} parent=1 // pred_check_branch
      %474 = sbr.rel (0) target = $region25
    $region24: #{tpu_custom_call.1} parent=1 // pred_region
      %476 = vsyncadd [#allocation4], 0
      %s478 = sshll.u32 [#allocation3], 4
      %s479 = int_to_ptr.vmem [resolvable:$true] %s478
      %s480 = sshll.u32 %s5, 4
      %s481 = int_to_ptr.hbm [resolvable:$true] %s480
      %483 = dma.vmem_to_hbm [thread:$0]  %s479, 16, %s481, [#allocation4]
    $region25: #{tpu_custom_call.1} parent=1 // pred_fallthru
      _
    // Predicated region
    $region26: #{tpu_custom_call.1} parent=1 // pred_check
      _
    $region27: #{tpu_custom_call.1} parent=1 // pred_check_branch
      %485 = sbr.rel (0) target = $region29
    $region28: #{tpu_custom_call.1} parent=1 // pred_region
      %487 = dma.done [#allocation4], 16
    $region29: #{tpu_custom_call.1} parent=1 // pred_fallthru
      _
    %488 = vsyncpa [#allocation4], 1

</llo_original>
